<compile_context>
chip_gen: v7x
topology: tpu7x:2x2x1
jax: 0.10.0
libtpu: 0.0.40
codegen_flags: <defaults>
</compile_context>

<pallas_src>
import functools

import jax
import jax.numpy as jnp
from jax.experimental import pallas as pl
from jax.experimental.pallas import tpu as pltpu

NEG_SLOPE = 0.01  # nn.LeakyReLU() default
LANE = 128
SUBLANE = 8


def _round_up(x, m):
    return ((x + m - 1) // m) * m


def _pad2d(a, rows, cols):
    r, c = a.shape
    return jnp.pad(a, ((0, rows - r), (0, cols - c)))


# ---------------- fused kernel ----------------


def _make_fused_kernel(layer_is_proj):
    """Build a kernel over one batch tile.

    args layout: x_ref, (w_0, b_0), ..., (w_{n-1}, b_{n-1}), w_out, b_out, o_ref
    Projected layers pass w as [W | W_res] concatenated along the output dim.
    """
    n = len(layer_is_proj)

    def kernel(*args):
        x_ref = args[0]
        w_out_ref = args[1 + 2 * n]
        b_out_ref = args[2 + 2 * n]
        o_ref = args[3 + 2 * n]

        fea = x_ref[...]  # (TB, d_in_pad) f32, activation stays on-chip
        for i, is_proj in enumerate(layer_is_proj):
            w = args[1 + 2 * i][...]
            b = args[2 + 2 * i][...]          # (1, d_out_pad)
            d_out = b.shape[-1]
            y = jnp.dot(fea, w, preferred_element_type=jnp.float32)
            if is_proj:
                # single MXU pass produced both the main path and the residual
                main = y[:, :d_out] + b       # lane-aligned slice (d_out % 128 == 0)
                res = y[:, d_out:]
            else:
                main = y + b
                res = fea                      # identity residual: plain VPU add
            fea = jnp.where(main >= 0, main, NEG_SLOPE * main) + res

        out = jnp.dot(fea, w_out_ref[...], preferred_element_type=jnp.float32) + b_out_ref[...]
        o_ref[...] = out.astype(o_ref.dtype)

    return kernel


# ---------------- fused forward (single pallas_call) ----------------


@functools.partial(jax.jit, static_argnames=("is_proj",))
def _fused_forward(fea, layer_ws, layer_bs, w_out, b_out, is_proj):
    batch, d_in = fea.shape
    pdin = layer_ws[0].shape[0] if layer_ws else w_out.shape[0]
    pod = w_out.shape[1]

    # Batch tiling: pad to a multiple of 8; grid the batch axis for large batches
    # so BlockSpec double-buffers tiles and the axis can shard across TCs (v7x).
    pb = _round_up(batch, SUBLANE)
    tb = pb if pb <= 256 else 256
    pb = _round_up(batch, tb)

    x = jnp.pad(fea, ((0, pb - batch), (0, pdin - d_in)))

    inputs = [x]
    in_specs = [pl.BlockSpec((tb, pdin), lambda i: (i, 0))]
    for w, b in zip(layer_ws, layer_bs):
        inputs += [w, b]
        in_specs += [
            pl.BlockSpec(w.shape, lambda i: (0, 0)),
            pl.BlockSpec(b.shape, lambda i: (0, 0)),
        ]
    inputs += [w_out, b_out]
    in_specs += [
        pl.BlockSpec(w_out.shape, lambda i: (0, 0)),
        pl.BlockSpec(b_out.shape, lambda i: (0, 0)),
    ]

    # VMEM budget: all weights resident + double-buffered activation tiles.
    # Capped well below v7x's 64 MiB physical VMEM.
    param_bytes = sum(int(a.size) * a.dtype.itemsize for a in inputs[1:])
    act_bytes = 4 * tb * (pdin + pod + sum(int(b.shape[-1]) for b in layer_bs))
    vmem_limit = int(min(max(4 * param_bytes + 4 * act_bytes, 16 << 20), 48 << 20))

    out = pl.pallas_call(
        _make_fused_kernel(is_proj),
        out_shape=jax.ShapeDtypeStruct((pb, pod), jnp.float32),
        grid=(pb // tb,),
        in_specs=in_specs,
        out_specs=pl.BlockSpec((tb, pod), lambda i: (i, 0)),
        compiler_params=pltpu.CompilerParams(
            dimension_semantics=("parallel",),
            vmem_limit_bytes=vmem_limit,
        ),
    )(*inputs)
    return out


# ---------------- parameter setup (deterministic, synthetic) ----------------


def init_params(key, input_dim, output_dim, hidden_layer_dims):
    dims = [input_dim] + list(hidden_layer_dims)
    params = {"fcs": [], "res_fcs": []}
    for i in range(len(dims) - 1):
        key, k1, k2, k3 = jax.random.split(key, 4)
        w = jax.random.normal(k1, (dims[i], dims[i + 1]), jnp.float32) * 0.1
        b = jax.random.normal(k2, (1, dims[i + 1]), jnp.float32) * 0.1
        params["fcs"].append((w, b))
        if dims[i] != dims[i + 1]:
            w_res = jax.random.normal(k3, (dims[i], dims[i + 1]), jnp.float32) * 0.1
            params["res_fcs"].append(w_res)
        else:
            params["res_fcs"].append(None)  # nn.Identity()
    key, k1, k2 = jax.random.split(key, 3)
    params["fc_out"] = (
        jax.random.normal(k1, (dims[-1], output_dim), jnp.float32) * 0.1,
        jax.random.normal(k2, (1, output_dim), jnp.float32) * 0.1,
    )
    return params


def prepare_fused_params(params):
    """Pad feature dims to multiples of 128 and fuse [W | W_res] for projected layers.

    Zero-padded lanes stay exactly zero through every layer (0 @ W = 0,
    LeakyReLU(0) = 0), so results are bit-exact after slicing.
    """
    layer_ws, layer_bs, is_proj = [], [], []
    for (w, b), w_res in zip(params["fcs"], params["res_fcs"]):
        din, dout = w.shape
        pdin, pdout = _round_up(din, LANE), _round_up(dout, LANE)
        w_p = _pad2d(w, pdin, pdout)
        b_p = _pad2d(b, 1, pdout)
        if w_res is None:
            layer_ws.append(w_p)
            is_proj.append(False)
        else:
            layer_ws.append(jnp.concatenate([w_p, _pad2d(w_res, pdin, pdout)], axis=1))
            is_proj.append(True)
        layer_bs.append(b_p)
    w_out, b_out = params["fc_out"]
    din, dout = w_out.shape
    pdin, pdout = _round_up(din, LANE), _round_up(dout, LANE)
    return {
        "layer_ws": tuple(layer_ws),
        "layer_bs": tuple(layer_bs),
        "is_proj": tuple(is_proj),
        "w_out": _pad2d(w_out, pdin, pdout),
        "b_out": _pad2d(b_out, 1, pdout),
    }


def residual_network_forward(params, fea):
    fused = prepare_fused_params(params)  # in real use, prepare once and reuse
    out_pad = _fused_forward(
        fea,
        fused["layer_ws"],
        fused["layer_bs"],
        fused["w_out"],
        fused["b_out"],
        fused["is_proj"],
    )
    batch = fea.shape[0]
    output_dim = params["fc_out"][0].shape[1]
    return out_pad[:batch, :output_dim]


# pure-JAX reference for verification
def residual_network_ref(params, fea):
    for (w, b), w_res in zip(params["fcs"], params["res_fcs"]):
        y = fea @ w + b
        y = jnp.where(y >= 0, y, NEG_SLOPE * y)
        fea = y + (fea if w_res is None else fea @ w_res)
    w_out, b_out = params["fc_out"]
    return fea @ w_out + b_out


if __name__ == "__main__":
    key = jax.random.PRNGKey(0)
    key, kx, kp = jax.random.split(key, 3)

    batch = 8
    input_dim = 32
    hidden_layer_dims = [64, 64]  # first layer: projected residual; second: identity residual
    output_dim = 8

    fea = jax.random.normal(kx, (batch, input_dim), jnp.float32)
    params = init_params(kp, input_dim, output_dim, hidden_layer_dims)

    out = residual_network_forward(params, fea)
    out = jax.block_until_ready(out)

    ref = residual_network_ref(params, fea)
    assert out.shape == (batch, output_dim)
    assert jnp.allclose(out, ref, atol=1e-5, rtol=1e-5), "Pallas output mismatch vs reference"

    print("KERNEL_OK")
</pallas_src>

<mosaic_0001>
module attributes {stable_mosaic.version = 11 : i64} {
  func.func @kernel(%arg0: i32, %arg1: memref<8x128xf32, #tpu.memory_space<vmem>>, %arg2: memref<128x256xf32, #tpu.memory_space<vmem>>, %arg3: memref<1x128xf32, #tpu.memory_space<vmem>>, %arg4: memref<128x128xf32, #tpu.memory_space<vmem>>, %arg5: memref<1x128xf32, #tpu.memory_space<vmem>>, %arg6: memref<128x128xf32, #tpu.memory_space<vmem>>, %arg7: memref<1x128xf32, #tpu.memory_space<vmem>>, %arg8: memref<8x128xf32, #tpu.memory_space<vmem>>) attributes {dimension_semantics = [#tpu.dimension_semantics<parallel>], iteration_bounds = array<i64: 1>, scalar_prefetch = 0 : i64, scratch_operands = 0 : i64, tpu.core_type = #tpu.core_type<tc>, window_params = [{transform_indices = @transform_0, window_bounds = array<i64: 8, 128>}, {pipeline_mode = #tpu.pipeline_mode<synchronous>, transform_indices = @transform_1, window_bounds = array<i64: 128, 256>}, {pipeline_mode = #tpu.pipeline_mode<synchronous>, transform_indices = @transform_2, window_bounds = array<i64: 1, 128>}, {pipeline_mode = #tpu.pipeline_mode<synchronous>, transform_indices = @transform_3, window_bounds = array<i64: 128, 128>}, {pipeline_mode = #tpu.pipeline_mode<synchronous>, transform_indices = @transform_4, window_bounds = array<i64: 1, 128>}, {pipeline_mode = #tpu.pipeline_mode<synchronous>, transform_indices = @transform_5, window_bounds = array<i64: 128, 128>}, {pipeline_mode = #tpu.pipeline_mode<synchronous>, transform_indices = @transform_6, window_bounds = array<i64: 1, 128>}, {transform_indices = @transform_7, window_bounds = array<i64: 8, 128>}]} {
    %c0 = arith.constant 0 : index
    %c0_0 = arith.constant 0 : index
    %0 = vector.load %arg1[%c0, %c0_0] : memref<8x128xf32, #tpu.memory_space<vmem>>, vector<8x128xf32>
    %c0_1 = arith.constant 0 : index
    %c0_2 = arith.constant 0 : index
    %1 = vector.load %arg2[%c0_1, %c0_2] : memref<128x256xf32, #tpu.memory_space<vmem>>, vector<128x256xf32>
    %c0_3 = arith.constant 0 : index
    %c0_4 = arith.constant 0 : index
    %2 = vector.load %arg3[%c0_3, %c0_4] : memref<1x128xf32, #tpu.memory_space<vmem>>, vector<1x128xf32>
    %cst = arith.constant dense<0.000000e+00> : vector<8x256xf32>
    %3 = tpu.matmul %0, %1, %cst {dimension_numbers = #tpu.dot_dimension_numbers<[1], [0], [0], [1], [0, 0, 1, 1], [], []>} : vector<8x128xf32>, vector<128x256xf32>, vector<8x256xf32> -> vector<8x256xf32>
    %4 = vector.extract_strided_slice %3 {offsets = [0, 0], sizes = [8, 128], strides = [1, 1]} : vector<8x256xf32> to vector<8x128xf32>
    %5 = vector.broadcast %2 : vector<1x128xf32> to vector<8x128xf32>
    %6 = arith.addf %4, %5 : vector<8x128xf32>
    %7 = vector.extract_strided_slice %3 {offsets = [0, 128], sizes = [8, 128], strides = [1, 1]} : vector<8x256xf32> to vector<8x128xf32>
    %cst_5 = arith.constant 0.000000e+00 : f32
    %8 = vector.broadcast %cst_5 : f32 to vector<8x128xf32>
    %9 = arith.cmpf oge, %6, %8 : vector<8x128xf32>
    %cst_6 = arith.constant 0.00999999977 : f32
    %10 = vector.broadcast %cst_6 : f32 to vector<8x128xf32>
    %11 = arith.mulf %10, %6 : vector<8x128xf32>
    %12 = arith.select %9, %6, %11 : vector<8x128xi1>, vector<8x128xf32>
    %13 = arith.addf %12, %7 : vector<8x128xf32>
    %c0_7 = arith.constant 0 : index
    %c0_8 = arith.constant 0 : index
    %14 = vector.load %arg4[%c0_7, %c0_8] : memref<128x128xf32, #tpu.memory_space<vmem>>, vector<128x128xf32>
    %c0_9 = arith.constant 0 : index
    %c0_10 = arith.constant 0 : index
    %15 = vector.load %arg5[%c0_9, %c0_10] : memref<1x128xf32, #tpu.memory_space<vmem>>, vector<1x128xf32>
    %cst_11 = arith.constant dense<0.000000e+00> : vector<8x128xf32>
    %16 = tpu.matmul %13, %14, %cst_11 {dimension_numbers = #tpu.dot_dimension_numbers<[1], [0], [0], [1], [0, 0, 1, 1], [], []>} : vector<8x128xf32>, vector<128x128xf32>, vector<8x128xf32> -> vector<8x128xf32>
    %17 = vector.broadcast %15 : vector<1x128xf32> to vector<8x128xf32>
    %18 = arith.addf %16, %17 : vector<8x128xf32>
    %cst_12 = arith.constant 0.000000e+00 : f32
    %19 = vector.broadcast %cst_12 : f32 to vector<8x128xf32>
    %20 = arith.cmpf oge, %18, %19 : vector<8x128xf32>
    %cst_13 = arith.constant 0.00999999977 : f32
    %21 = vector.broadcast %cst_13 : f32 to vector<8x128xf32>
    %22 = arith.mulf %21, %18 : vector<8x128xf32>
    %23 = arith.select %20, %18, %22 : vector<8x128xi1>, vector<8x128xf32>
    %24 = arith.addf %23, %13 : vector<8x128xf32>
    %c0_14 = arith.constant 0 : index
    %c0_15 = arith.constant 0 : index
    %25 = vector.load %arg6[%c0_14, %c0_15] : memref<128x128xf32, #tpu.memory_space<vmem>>, vector<128x128xf32>
    %cst_16 = arith.constant dense<0.000000e+00> : vector<8x128xf32>
    %26 = tpu.matmul %24, %25, %cst_16 {dimension_numbers = #tpu.dot_dimension_numbers<[1], [0], [0], [1], [0, 0, 1, 1], [], []>} : vector<8x128xf32>, vector<128x128xf32>, vector<8x128xf32> -> vector<8x128xf32>
    %c0_17 = arith.constant 0 : index
    %c0_18 = arith.constant 0 : index
    %27 = vector.load %arg7[%c0_17, %c0_18] : memref<1x128xf32, #tpu.memory_space<vmem>>, vector<1x128xf32>
    %28 = vector.broadcast %27 : vector<1x128xf32> to vector<8x128xf32>
    %29 = arith.addf %26, %28 : vector<8x128xf32>
    %c0_19 = arith.constant 0 : index
    %c0_20 = arith.constant 0 : index
    %30 = vector.load %arg8[%c0_19, %c0_20] : memref<8x128xf32, #tpu.memory_space<vmem>>, vector<8x128xf32>
    tpu.vector_store %arg8[%c0_19, %c0_20], %29 {strides = array<i32>} : memref<8x128xf32, #tpu.memory_space<vmem>>, vector<8x128xf32>,
    return
  }
  func.func @transform_0(%arg0: i32) -> (i32, i32) {
    %c0_i32 = arith.constant 0 : i32
    %c0_i32_0 = arith.constant 0 : i32
    return %arg0, %c0_i32 : i32, i32
  }
  func.func @transform_1(%arg0: i32) -> (i32, i32) {
    %c0_i32 = arith.constant 0 : i32
    %c0_i32_0 = arith.constant 0 : i32
    %c0_i32_1 = arith.constant 0 : i32
    return %c0_i32, %c0_i32_0 : i32, i32
  }
  func.func @transform_2(%arg0: i32) -> (i32, i32) {
    %c0_i32 = arith.constant 0 : i32
    %c0_i32_0 = arith.constant 0 : i32
    %c0_i32_1 = arith.constant 0 : i32
    return %c0_i32, %c0_i32_0 : i32, i32
  }
  func.func @transform_3(%arg0: i32) -> (i32, i32) {
    %c0_i32 = arith.constant 0 : i32
    %c0_i32_0 = arith.constant 0 : i32
    %c0_i32_1 = arith.constant 0 : i32
    return %c0_i32, %c0_i32_0 : i32, i32
  }
  func.func @transform_4(%arg0: i32) -> (i32, i32) {
    %c0_i32 = arith.constant 0 : i32
    %c0_i32_0 = arith.constant 0 : i32
    %c0_i32_1 = arith.constant 0 : i32
    return %c0_i32, %c0_i32_0 : i32, i32
  }
  func.func @transform_5(%arg0: i32) -> (i32, i32) {
    %c0_i32 = arith.constant 0 : i32
    %c0_i32_0 = arith.constant 0 : i32
    %c0_i32_1 = arith.constant 0 : i32
    return %c0_i32, %c0_i32_0 : i32, i32
  }
  func.func @transform_6(%arg0: i32) -> (i32, i32) {
    %c0_i32 = arith.constant 0 : i32
    %c0_i32_0 = arith.constant 0 : i32
    %c0_i32_1 = arith.constant 0 : i32
    return %c0_i32, %c0_i32_0 : i32, i32
  }
  func.func @transform_7(%arg0: i32) -> (i32, i32) {
    %c0_i32 = arith.constant 0 : i32
    %c0_i32_0 = arith.constant 0 : i32
    return %arg0, %c0_i32 : i32, i32
  }
}

</mosaic_0001>

<llo_original>
// kernel: _fused_forward.1
$region0: #{_fused_forward.1}
  #allocation0 [shape = 'u32[]', space=smem, size = 0x4, offset = 0x4, fixed_abs, tag = 'smem constant byte address 0x4 - core index']
  #allocation1 [shape = 'u32[144,128]{1,0:T(1,128)}', space=vmem, size = 0x12000, scoped, tag = 'internal scratch']
  %s0 = inlined_call_operand.vmem [shape: f32[8,128], index: 0, kind: input, shape index: {}]
  %s1 = inlined_call_operand.hbm [shape: f32[128,256], index: 1, kind: input, shape index: {}]
  %s2 = inlined_call_operand.vmem [shape: f32[1,128], index: 2, kind: input, shape index: {}]
  %s3 = inlined_call_operand.hbm [shape: f32[128,128], index: 3, kind: input, shape index: {}]
  %s4 = inlined_call_operand.vmem [shape: f32[1,128], index: 4, kind: input, shape index: {}]
  %s5 = inlined_call_operand.hbm [shape: f32[128,128], index: 5, kind: input, shape index: {}]
  %s6 = inlined_call_operand.vmem [shape: f32[1,128], index: 6, kind: input, shape index: {}]
  %s7 = inlined_call_operand.hbm [shape: f32[8,128], index: 7, kind: output, shape index: {}]
  %s8 = sld [smem:[#allocation0]]
  $region50: #{_fused_forward.1} parent=0
    _
  %s10 = ssub.s32 1, %s8
  %s11 = scalar_select 0, %s10, %s8
  $region1: #{_fused_forward.1} parent=0
    #allocation2 [shape = 'u8[131072]{0}', space=vmem, size = 0x20000, scoped, tag = 'input window, operand 1, single buffered']
    #allocation3 [shape = 's32[1]{0}', space=sflag, size = 0x4, scoped, tag = 'scoped memory for _fused_forward.1']
    #allocation4 [shape = 's32[1]{0}', space=sflag, size = 0x4, scoped, tag = 'scoped memory for _fused_forward.1']
    #allocation5 [shape = 'u8[65536]{0}', space=vmem, size = 0x10000, scoped, tag = 'input window, operand 3, single buffered']
    #allocation6 [shape = 's32[1]{0}', space=sflag, size = 0x4, scoped, tag = 'scoped memory for _fused_forward.1']
    #allocation7 [shape = 'u8[65536]{0}', space=vmem, size = 0x10000, scoped, tag = 'input window, operand 5, single buffered']
    #allocation8 [shape = 'u8[4096]{0}', space=vmem, size = 0x1000, scoped, tag = 'output window, operand 0, single buffered']
    %12 = vsyncpa [#allocation3], 0
    %13 = vsyncpa [#allocation6], 0
    %14 = vsyncpa [#allocation4], 0
    // Predicated region
    $region2: #{_fused_forward.1} parent=1 // pred_check
      _
    $region3: #{_fused_forward.1} parent=1 // pred_check_branch
      %16 = sbr.rel (0) target = $region5
    $region4: #{_fused_forward.1} parent=1 // pred_region
      _
    $region5: #{_fused_forward.1} parent=1 // pred_fallthru
      _
    // Predicated region
    $region6: #{_fused_forward.1} parent=1 // pred_check
      _
    $region7: #{_fused_forward.1} parent=1 // pred_check_branch
      %18 = sbr.rel (0) target = $region9
    $region8: #{_fused_forward.1} parent=1 // pred_region
      %s20 = ssub.s32 4096, 4096
      %21 = vsyncadd [#allocation3], %s20
      %s22 = sshll.u32 [#allocation2], 4
      %s23 = int_to_ptr.vmem [resolvable:$true] %s22
      %28 = dma.hbm_to_vmem [thread:$0]  %s1, 4096, %s23, [#allocation3], 256, 256, 16
    $region9: #{_fused_forward.1} parent=1 // pred_fallthru
      _
    // Predicated region
    $region10: #{_fused_forward.1} parent=1 // pred_check
      _
    $region11: #{_fused_forward.1} parent=1 // pred_check_branch
      %30 = sbr.rel (0) target = $region13
    $region12: #{_fused_forward.1} parent=1 // pred_region
      _
    $region13: #{_fused_forward.1} parent=1 // pred_fallthru
      _
    // Predicated region
    $region14: #{_fused_forward.1} parent=1 // pred_check
      _
    $region15: #{_fused_forward.1} parent=1 // pred_check_branch
      %32 = sbr.rel (0) target = $region17
    $region16: #{_fused_forward.1} parent=1 // pred_region
      %s34 = ssub.s32 2048, 2048
      %35 = vsyncadd [#allocation6], %s34
      %s36 = sshll.u32 [#allocation5], 4
      %s37 = int_to_ptr.vmem [resolvable:$true] %s36
      %42 = dma.hbm_to_vmem [thread:$0]  %s3, 2048, %s37, [#allocation6], 128, 128, 8
    $region17: #{_fused_forward.1} parent=1 // pred_fallthru
      _
    // Predicated region
    $region18: #{_fused_forward.1} parent=1 // pred_check
      _
    $region19: #{_fused_forward.1} parent=1 // pred_check_branch
      %44 = sbr.rel (0) target = $region21
    $region20: #{_fused_forward.1} parent=1 // pred_region
      _
    $region21: #{_fused_forward.1} parent=1 // pred_fallthru
      _
    // Predicated region
    $region22: #{_fused_forward.1} parent=1 // pred_check
      _
    $region23: #{_fused_forward.1} parent=1 // pred_check_branch
      %46 = sbr.rel (0) target = $region25
    $region24: #{_fused_forward.1} parent=1 // pred_region
      %s48 = ssub.s32 2048, 2048
      %49 = vsyncadd [#allocation6], %s48
      %s50 = sshll.u32 [#allocation7], 4
      %s51 = int_to_ptr.vmem [resolvable:$true] %s50
      %56 = dma.hbm_to_vmem [thread:$0]  %s5, 2048, %s51, [#allocation6], 128, 128, 8
    $region25: #{_fused_forward.1} parent=1 // pred_fallthru
      _
    // Predicated region
    $region26: #{_fused_forward.1} parent=1 // pred_check
      _
    $region27: #{_fused_forward.1} parent=1 // pred_check_branch
      %58 = sbr.rel (0) target = $region29
    $region28: #{_fused_forward.1} parent=1 // pred_region
      _
    $region29: #{_fused_forward.1} parent=1 // pred_fallthru
      _
    // Predicated region
    $region30: #{_fused_forward.1} parent=1 // pred_check
      _
    $region31: #{_fused_forward.1} parent=1 // pred_check_branch
      %60 = sbr.rel (0) target = $region33
    $region32: #{_fused_forward.1} parent=1 // pred_region
      %61 = dma.done [#allocation3], 4096
    $region33: #{_fused_forward.1} parent=1 // pred_fallthru
      _
    // Predicated region
    $region34: #{_fused_forward.1} parent=1 // pred_check
      _
    $region35: #{_fused_forward.1} parent=1 // pred_check_branch
      %63 = sbr.rel (0) target = $region37
    $region36: #{_fused_forward.1} parent=1 // pred_region
      %64 = dma.done [#allocation6], 2048
    $region37: #{_fused_forward.1} parent=1 // pred_fallthru
      _
    // Predicated region
    $region38: #{_fused_forward.1} parent=1 // pred_check
      _
    $region39: #{_fused_forward.1} parent=1 // pred_check_branch
      %66 = sbr.rel (0) target = $region41
    $region40: #{_fused_forward.1} parent=1 // pred_region
      %67 = dma.done [#allocation6], 2048
    $region41: #{_fused_forward.1} parent=1 // pred_fallthru
      _
    %v68 = vld [vmem:[%s0] sm:$0xff]
    %v69 = vld [vmem:[#allocation2] sm:$0xff]
    %v70 = vld [vmem:[#allocation2 + $0x8] sm:$0xff]
    %v71 = vld [vmem:[#allocation2 + $0x10] sm:$0xff]
    %v72 = vld [vmem:[#allocation2 + $0x18] sm:$0xff]
    %v73 = vld [vmem:[#allocation2 + $0x20] sm:$0xff]
    %v74 = vld [vmem:[#allocation2 + $0x28] sm:$0xff]
    %v75 = vld [vmem:[#allocation2 + $0x30] sm:$0xff]
    %v76 = vld [vmem:[#allocation2 + $0x38] sm:$0xff]
    %v77 = vld [vmem:[#allocation2 + $0x40] sm:$0xff]
    %v78 = vld [vmem:[#allocation2 + $0x48] sm:$0xff]
    %v79 = vld [vmem:[#allocation2 + $0x50] sm:$0xff]
    %v80 = vld [vmem:[#allocation2 + $0x58] sm:$0xff]
    %v81 = vld [vmem:[#allocation2 + $0x60] sm:$0xff]
    %v82 = vld [vmem:[#allocation2 + $0x68] sm:$0xff]
    %v83 = vld [vmem:[#allocation2 + $0x70] sm:$0xff]
    %v84 = vld [vmem:[#allocation2 + $0x78] sm:$0xff]
    %v85 = vld [vmem:[#allocation2 + $0x80] sm:$0xff]
    %v86 = vld [vmem:[#allocation2 + $0x88] sm:$0xff]
    %v87 = vld [vmem:[#allocation2 + $0x90] sm:$0xff]
    %v88 = vld [vmem:[#allocation2 + $0x98] sm:$0xff]
    %v89 = vld [vmem:[#allocation2 + $0xa0] sm:$0xff]
    %v90 = vld [vmem:[#allocation2 + $0xa8] sm:$0xff]
    %v91 = vld [vmem:[#allocation2 + $0xb0] sm:$0xff]
    %v92 = vld [vmem:[#allocation2 + $0xb8] sm:$0xff]
    %v93 = vld [vmem:[#allocation2 + $0xc0] sm:$0xff]
    %v94 = vld [vmem:[#allocation2 + $0xc8] sm:$0xff]
    %v95 = vld [vmem:[#allocation2 + $0xd0] sm:$0xff]
    %v96 = vld [vmem:[#allocation2 + $0xd8] sm:$0xff]
    %v97 = vld [vmem:[#allocation2 + $0xe0] sm:$0xff]
    %v98 = vld [vmem:[#allocation2 + $0xe8] sm:$0xff]
    %v99 = vld [vmem:[#allocation2 + $0xf0] sm:$0xff]
    %v100 = vld [vmem:[#allocation2 + $0xf8] sm:$0xff]
    %v101 = vld [vmem:[%s2] sm:$0x1]
    %102 = vmatprep.subr.mxu0 %v70
    %103 = vmatpush1.msra.mxu0 %v69
    %104 = vmatprep.subr.mxu0 %v72
    %105 = vmatpush1.msra.mxu0 %v71
    %106 = vmatprep.subr.mxu0 %v74
    %107 = vmatpush1.msra.mxu0 %v73
    %108 = vmatprep.subr.mxu0 %v76
    %109 = vmatpush1.msra.mxu0 %v75
    %110 = vmatprep.subr.mxu0 %v78
    %111 = vmatpush1.msra.mxu0 %v77
    %112 = vmatprep.subr.mxu0 %v80
    %113 = vmatpush1.msra.mxu0 %v79
    %114 = vmatprep.subr.mxu0 %v82
    %115 = vmatpush1.msra.mxu0 %v81
    %116 = vmatprep.subr.mxu0 %v84
    %117 = vmatpush1.msra.mxu0 %v83
    %118 = vmatprep.subr.mxu0 %v86
    %119 = vmatpush1.msra.mxu0 %v85
    %120 = vmatprep.subr.mxu0 %v88
    %121 = vmatpush1.msra.mxu0 %v87
    %122 = vmatprep.subr.mxu0 %v90
    %123 = vmatpush1.msra.mxu0 %v89
    %124 = vmatprep.subr.mxu0 %v92
    %125 = vmatpush1.msra.mxu0 %v91
    %126 = vmatprep.subr.mxu0 %v94
    %127 = vmatpush1.msra.mxu0 %v93
    %128 = vmatprep.subr.mxu0 %v96
    %129 = vmatpush1.msra.mxu0 %v95
    %130 = vmatprep.subr.mxu0 %v98
    %131 = vmatpush1.msra.mxu0 %v97
    %132 = vmatprep.subr.mxu0 %v100
    %133 = vmatpush1.msra.mxu0 %v99
    %134 = vmatprep.subr.mxu0 0.0
    %135 = vmatpush1.msra.mxu0 0.0
    %136 = vmatprep.subr.mxu0 0.0
    %137 = vmatpush1.msra.mxu0 0.0
    %138 = vmatprep.subr.mxu0 0.0
    %139 = vmatpush1.msra.mxu0 0.0
    %140 = vmatprep.subr.mxu0 0.0
    %141 = vmatpush1.msra.mxu0 0.0
    %142 = vmatprep.subr.mxu0 0.0
    %143 = vmatpush1.msra.mxu0 0.0
    %144 = vmatprep.subr.mxu0 0.0
    %145 = vmatpush1.msra.mxu0 0.0
    %146 = vmatprep.subr.mxu0 0.0
    %147 = vmatpush1.msra.mxu0 0.0
    %148 = vmatprep.subr.mxu0 0.0
    %149 = vmatpush1.msra.mxu0 0.0
    %150 = vmatprep.subr.mxu0 0.0
    %151 = vmatpush1.msra.mxu0 0.0
    %152 = vmatprep.subr.mxu0 0.0
    %153 = vmatpush1.msra.mxu0 0.0
    %154 = vmatprep.subr.mxu0 0.0
    %155 = vmatpush1.msra.mxu0 0.0
    %156 = vmatprep.subr.mxu0 0.0
    %157 = vmatpush1.msra.mxu0 0.0
    %158 = vmatprep.subr.mxu0 0.0
    %159 = vmatpush1.msra.mxu0 0.0
    %160 = vmatprep.subr.mxu0 0.0
    %161 = vmatpush1.msra.mxu0 0.0
    %162 = vmatprep.subr.mxu0 0.0
    %163 = vmatpush1.msra.mxu0 0.0
    %164 = vmatprep.subr.mxu0 0.0
    %165 = vmatpush1.msra.mxu0 0.0
    %166 = vmatprep.mubr.f32.mxu0 0.0
    %167 = vmatmul.mubr.f32.gmra.mrb[0].mxu0 %v68
    %v168 = vpop.f32.mrb[0].mxu0
    %v169 = vadd.f32 0.0, %v168
    %v170 = vpop.f32.mrb[0].mxu0
    %v171 = vadd.f32 0.0, %v170
    %172 = vdwg.mxu0
    %v174 = vlaneseq
    %v175 = vshrl.u32 %v174, 7
    %v176 = vsub.s32 0, %v175
    %v177 = vrot.slane %v101, %v176
    %v179 = vadd.f32 %v169, %v177
    %vm180 = vcmp.ge.f32.partialorder %v179, 0.0
    %v181 = vmul.f32 %v179, 0.01
    %v182 = vsel %vm180, %v179, %v181
    %v183 = vadd.f32 %v182, %v171
    %v184 = vld [vmem:[#allocation5] sm:$0xff]
    %v185 = vld [vmem:[#allocation5 + $0x8] sm:$0xff]
    %v186 = vld [vmem:[#allocation5 + $0x10] sm:$0xff]
    %v187 = vld [vmem:[#allocation5 + $0x18] sm:$0xff]
    %v188 = vld [vmem:[#allocation5 + $0x20] sm:$0xff]
    %v189 = vld [vmem:[#allocation5 + $0x28] sm:$0xff]
    %v190 = vld [vmem:[#allocation5 + $0x30] sm:$0xff]
    %v191 = vld [vmem:[#allocation5 + $0x38] sm:$0xff]
    %v192 = vld [vmem:[#allocation5 + $0x40] sm:$0xff]
    %v193 = vld [vmem:[#allocation5 + $0x48] sm:$0xff]
    %v194 = vld [vmem:[#allocation5 + $0x50] sm:$0xff]
    %v195 = vld [vmem:[#allocation5 + $0x58] sm:$0xff]
    %v196 = vld [vmem:[#allocation5 + $0x60] sm:$0xff]
    %v197 = vld [vmem:[#allocation5 + $0x68] sm:$0xff]
    %v198 = vld [vmem:[#allocation5 + $0x70] sm:$0xff]
    %v199 = vld [vmem:[#allocation5 + $0x78] sm:$0xff]
    %v200 = vld [vmem:[%s4] sm:$0x1]
    %v202 = vlaneseq
    %v203 = vshrl.u32 %v202, 7
    %v204 = vsub.s32 0, %v203
    %v205 = vrot.slane %v200, %v204
    %207 = vmatprep.subr.mxu0 0.0
    %208 = vmatpush1.msra.mxu0 %v184
    %209 = vmatprep.subr.mxu0 0.0
    %210 = vmatpush1.msra.mxu0 %v185
    %211 = vmatprep.subr.mxu0 0.0
    %212 = vmatpush1.msra.mxu0 %v186
    %213 = vmatprep.subr.mxu0 0.0
    %214 = vmatpush1.msra.mxu0 %v187
    %215 = vmatprep.subr.mxu0 0.0
    %216 = vmatpush1.msra.mxu0 %v188
    %217 = vmatprep.subr.mxu0 0.0
    %218 = vmatpush1.msra.mxu0 %v189
    %219 = vmatprep.subr.mxu0 0.0
    %220 = vmatpush1.msra.mxu0 %v190
    %221 = vmatprep.subr.mxu0 0.0
    %222 = vmatpush1.msra.mxu0 %v191
    %223 = vmatprep.subr.mxu0 0.0
    %224 = vmatpush1.msra.mxu0 %v192
    %225 = vmatprep.subr.mxu0 0.0
    %226 = vmatpush1.msra.mxu0 %v193
    %227 = vmatprep.subr.mxu0 0.0
    %228 = vmatpush1.msra.mxu0 %v194
    %229 = vmatprep.subr.mxu0 0.0
    %230 = vmatpush1.msra.mxu0 %v195
    %231 = vmatprep.subr.mxu0 0.0
    %232 = vmatpush1.msra.mxu0 %v196
    %233 = vmatprep.subr.mxu0 0.0
    %234 = vmatpush1.msra.mxu0 %v197
    %235 = vmatprep.subr.mxu0 0.0
    %236 = vmatpush1.msra.mxu0 %v198
    %237 = vmatprep.subr.mxu0 0.0
    %238 = vmatpush1.msra.mxu0 %v199
    %239 = vmatprep.subr.mxu0 0.0
    %240 = vmatpush1.msra.mxu0 0.0
    %241 = vmatprep.subr.mxu0 0.0
    %242 = vmatpush1.msra.mxu0 0.0
    %243 = vmatprep.subr.mxu0 0.0
    %244 = vmatpush1.msra.mxu0 0.0
    %245 = vmatprep.subr.mxu0 0.0
    %246 = vmatpush1.msra.mxu0 0.0
    %247 = vmatprep.subr.mxu0 0.0
    %248 = vmatpush1.msra.mxu0 0.0
    %249 = vmatprep.subr.mxu0 0.0
    %250 = vmatpush1.msra.mxu0 0.0
    %251 = vmatprep.subr.mxu0 0.0
    %252 = vmatpush1.msra.mxu0 0.0
    %253 = vmatprep.subr.mxu0 0.0
    %254 = vmatpush1.msra.mxu0 0.0
    %255 = vmatprep.subr.mxu0 0.0
    %256 = vmatpush1.msra.mxu0 0.0
    %257 = vmatprep.subr.mxu0 0.0
    %258 = vmatpush1.msra.mxu0 0.0
    %259 = vmatprep.subr.mxu0 0.0
    %260 = vmatpush1.msra.mxu0 0.0
    %261 = vmatprep.subr.mxu0 0.0
    %262 = vmatpush1.msra.mxu0 0.0
    %263 = vmatprep.subr.mxu0 0.0
    %264 = vmatpush1.msra.mxu0 0.0
    %265 = vmatprep.subr.mxu0 0.0
    %266 = vmatpush1.msra.mxu0 0.0
    %267 = vmatprep.subr.mxu0 0.0
    %268 = vmatpush1.msra.mxu0 0.0
    %269 = vmatprep.subr.mxu0 0.0
    %270 = vmatpush1.msra.mxu0 0.0
    %271 = vmatprep.mubr.f32.mxu0 0.0
    %272 = vmatmul.mubr.f32.gmra.mrb[0].mxu0 %v183
    %v273 = vpop.f32.mrb[0].mxu0
    %v274 = vadd.f32 %v205, %v273
    %v275 = vpop.f32.mrb[0].mxu0
    %276 = vdwg.mxu0
    %vm277 = vcmp.ge.f32.partialorder %v274, 0.0
    %v278 = vmul.f32 %v274, 0.01
    %v279 = vsel %vm277, %v274, %v278
    %v280 = vadd.f32 %v279, %v183
    %v281 = vld [vmem:[#allocation7] sm:$0xff]
    %v282 = vld [vmem:[#allocation7 + $0x8] sm:$0xff]
    %v283 = vld [vmem:[#allocation7 + $0x10] sm:$0xff]
    %v284 = vld [vmem:[#allocation7 + $0x18] sm:$0xff]
    %v285 = vld [vmem:[#allocation7 + $0x20] sm:$0xff]
    %v286 = vld [vmem:[#allocation7 + $0x28] sm:$0xff]
    %v287 = vld [vmem:[#allocation7 + $0x30] sm:$0xff]
    %v288 = vld [vmem:[#allocation7 + $0x38] sm:$0xff]
    %v289 = vld [vmem:[#allocation7 + $0x40] sm:$0xff]
    %v290 = vld [vmem:[#allocation7 + $0x48] sm:$0xff]
    %v291 = vld [vmem:[#allocation7 + $0x50] sm:$0xff]
    %v292 = vld [vmem:[#allocation7 + $0x58] sm:$0xff]
    %v293 = vld [vmem:[#allocation7 + $0x60] sm:$0xff]
    %v294 = vld [vmem:[#allocation7 + $0x68] sm:$0xff]
    %v295 = vld [vmem:[#allocation7 + $0x70] sm:$0xff]
    %v296 = vld [vmem:[#allocation7 + $0x78] sm:$0xff]
    %v297 = vld [vmem:[%s6] sm:$0x1]
    %v299 = vlaneseq
    %v300 = vshrl.u32 %v299, 7
    %v301 = vsub.s32 0, %v300
    %v302 = vrot.slane %v297, %v301
    %304 = vmatprep.subr.mxu0 0.0
    %305 = vmatpush1.msra.mxu0 %v281
    %306 = vmatprep.subr.mxu0 0.0
    %307 = vmatpush1.msra.mxu0 %v282
    %308 = vmatprep.subr.mxu0 0.0
    %309 = vmatpush1.msra.mxu0 %v283
    %310 = vmatprep.subr.mxu0 0.0
    %311 = vmatpush1.msra.mxu0 %v284
    %312 = vmatprep.subr.mxu0 0.0
    %313 = vmatpush1.msra.mxu0 %v285
    %314 = vmatprep.subr.mxu0 0.0
    %315 = vmatpush1.msra.mxu0 %v286
    %316 = vmatprep.subr.mxu0 0.0
    %317 = vmatpush1.msra.mxu0 %v287
    %318 = vmatprep.subr.mxu0 0.0
    %319 = vmatpush1.msra.mxu0 %v288
    %320 = vmatprep.subr.mxu0 0.0
    %321 = vmatpush1.msra.mxu0 %v289
    %322 = vmatprep.subr.mxu0 0.0
    %323 = vmatpush1.msra.mxu0 %v290
    %324 = vmatprep.subr.mxu0 0.0
    %325 = vmatpush1.msra.mxu0 %v291
    %326 = vmatprep.subr.mxu0 0.0
    %327 = vmatpush1.msra.mxu0 %v292
    %328 = vmatprep.subr.mxu0 0.0
    %329 = vmatpush1.msra.mxu0 %v293
    %330 = vmatprep.subr.mxu0 0.0
    %331 = vmatpush1.msra.mxu0 %v294
    %332 = vmatprep.subr.mxu0 0.0
    %333 = vmatpush1.msra.mxu0 %v295
    %334 = vmatprep.subr.mxu0 0.0
    %335 = vmatpush1.msra.mxu0 %v296
    %336 = vmatprep.subr.mxu0 0.0
    %337 = vmatpush1.msra.mxu0 0.0
    %338 = vmatprep.subr.mxu0 0.0
    %339 = vmatpush1.msra.mxu0 0.0
    %340 = vmatprep.subr.mxu0 0.0
    %341 = vmatpush1.msra.mxu0 0.0
    %342 = vmatprep.subr.mxu0 0.0
    %343 = vmatpush1.msra.mxu0 0.0
    %344 = vmatprep.subr.mxu0 0.0
    %345 = vmatpush1.msra.mxu0 0.0
    %346 = vmatprep.subr.mxu0 0.0
    %347 = vmatpush1.msra.mxu0 0.0
    %348 = vmatprep.subr.mxu0 0.0
    %349 = vmatpush1.msra.mxu0 0.0
    %350 = vmatprep.subr.mxu0 0.0
    %351 = vmatpush1.msra.mxu0 0.0
    %352 = vmatprep.subr.mxu0 0.0
    %353 = vmatpush1.msra.mxu0 0.0
    %354 = vmatprep.subr.mxu0 0.0
    %355 = vmatpush1.msra.mxu0 0.0
    %356 = vmatprep.subr.mxu0 0.0
    %357 = vmatpush1.msra.mxu0 0.0
    %358 = vmatprep.subr.mxu0 0.0
    %359 = vmatpush1.msra.mxu0 0.0
    %360 = vmatprep.subr.mxu0 0.0
    %361 = vmatpush1.msra.mxu0 0.0
    %362 = vmatprep.subr.mxu0 0.0
    %363 = vmatpush1.msra.mxu0 0.0
    %364 = vmatprep.subr.mxu0 0.0
    %365 = vmatpush1.msra.mxu0 0.0
    %366 = vmatprep.subr.mxu0 0.0
    %367 = vmatpush1.msra.mxu0 0.0
    %368 = vmatprep.mubr.f32.mxu0 0.0
    %369 = vmatmul.mubr.f32.gmra.mrb[0].mxu0 %v280
    %v370 = vpop.f32.mrb[0].mxu0
    %v371 = vadd.f32 %v302, %v370
    %v372 = vpop.f32.mrb[0].mxu0
    %373 = vdwg.mxu0
    %374 = vst [vmem:[#allocation8] sm:$0xff] %v371
    // Predicated region
    $region42: #{_fused_forward.1} parent=1 // pred_check
      _
    $region43: #{_fused_forward.1} parent=1 // pred_check_branch
      %376 = sbr.rel (0) target = $region45
    $region44: #{_fused_forward.1} parent=1 // pred_region
      %s378 = ssub.s32 128, 128
      %379 = vsyncadd [#allocation4], %s378
      %s381 = sshll.u32 [#allocation8], 4
      %s382 = int_to_ptr.vmem [resolvable:$true] %s381
      %384 = dma.vmem_to_hbm [thread:$0]  %s382, 128, %s7, [#allocation4]
    $region45: #{_fused_forward.1} parent=1 // pred_fallthru
      _
    // Predicated region
    $region46: #{_fused_forward.1} parent=1 // pred_check
      _
    $region47: #{_fused_forward.1} parent=1 // pred_check_branch
      %386 = sbr.rel (0) target = $region49
    $region48: #{_fused_forward.1} parent=1 // pred_region
      %387 = dma.done [#allocation4], 128
    $region49: #{_fused_forward.1} parent=1 // pred_fallthru
      _
    %388 = vsyncpa [#allocation3], 1
    %389 = vsyncpa [#allocation6], 1
    %390 = vsyncpa [#allocation4], 1

</llo_original>
